<compile_context>
chip_gen: v5e
topology: v5e:2x2
jax: 0.10.0
libtpu: 0.0.40
codegen_flags: <defaults>
</compile_context>

<pallas_src>
import jax
import jax.numpy as jnp
from jax.experimental import pallas as pl
from jax.experimental.pallas import tpu as pltpu

# --- module hyper-parameters (synthetic, deterministic) -----------------------
ATOM_NEIGHBOR_IDS_LEN = 100                  # stand-in for len(ATOM_NEIGHBOR_IDS)
NUM_EMBEDDINGS = ATOM_NEIGHBOR_IDS_LEN + 1   # 101, padded to 128 for the table
V_PAD = 128
KERNEL_DIM = 128                             # kernel_dim (K)
INPUT_DIM = 16                               # input_dim  (D)
N = 16                                       # number of atoms (rows)
MAX_TM = 128                                 # row-tile cap for large N


def _round_up(x, m):
    return ((x + m - 1) // m) * m


def embed_ncp_fused_kernel(ids_ref, props_ref, t1_ref, w2_ref, b_ref, out_ref):
    """One row-tile of the (compress-fused) EmbedNCP forward pass.

    ids_ref  : (TM, 1)      int32  atom type ids
    props_ref: (TM, D)      f32    atom properties
    t1_ref   : (V_PAD, K)   f32    fused table  = E_pad @ Wc_top
    w2_ref   : (D, K)       f32    fused weight = Wp @ Wc_bot
    b_ref    : (1, K)       f32    fused bias   = bp @ Wc_bot + bc
    out_ref  : (TM, K)      f32
    """
    ids = ids_ref[...]                                    # (TM, 1) int32
    tm = ids.shape[0]
    vpad = t1_ref.shape[0]

    # Embedding gather as one-hot @ fused-table (exact: one-hot is 0/1, single
    # nonzero per row, f32 accumulation).
    iota = jax.lax.broadcasted_iota(jnp.int32, (tm, vpad), 1)
    one_hot = (iota == ids).astype(jnp.float32)           # (TM, V_PAD)
    atom = jnp.dot(one_hot, t1_ref[...],
                   preferred_element_type=jnp.float32)    # (TM, K)

    # Fused property path: props @ (Wp @ Wc_bot)
    prop = jnp.dot(props_ref[...], w2_ref[...],
                   preferred_element_type=jnp.float32)    # (TM, K)

    out_ref[...] = (atom + prop + b_ref[...]).astype(out_ref.dtype)


def embed_ncp_forward(atom_type_ids, props, emb_table_pad, w_prop, b_prop,
                      w_comp, b_comp):
    n, d = props.shape
    vpad, k = emb_table_pad.shape

    # ---- host-side algebraic fusion of the compress layer --------------------
    # out = [E[ids], props@Wp + bp] @ Wc + bc
    #     = E[ids] @ Wc[:K]  +  props @ (Wp @ Wc[K:])  +  (bp @ Wc[K:] + bc)
    t1 = emb_table_pad @ w_comp[:k]                       # (V_PAD, K)
    w2 = w_prop @ w_comp[k:]                              # (D, K)
    b_fused = b_prop @ w_comp[k:] + b_comp                # (1, K)

    # ---- row tiling: one grid step for small N, 128-row tiles for large N ----
    tm = min(MAX_TM, _round_up(n, 8))
    n_pad = _round_up(n, tm)
    ids2d = jnp.zeros((n_pad, 1), jnp.int32)
    ids2d = ids2d.at[:n, 0].set(atom_type_ids.astype(jnp.int32))
    props_p = jnp.zeros((n_pad, d), jnp.float32).at[:n].set(props)

    grid = (n_pad // tm,)
    flops = 2 * n_pad * (vpad + d) * k
    bytes_accessed = 4 * (vpad * k + d * k + k + n_pad * (1 + d + k))

    out = pl.pallas_call(
        embed_ncp_fused_kernel,
        out_shape=jax.ShapeDtypeStruct((n_pad, k), jnp.float32),
        grid_spec=pltpu.PrefetchScalarGridSpec(
            num_scalar_prefetch=0,
            grid=grid,
            in_specs=[
                pl.BlockSpec((tm, 1), lambda i: (i, 0)),      # ids tile
                pl.BlockSpec((tm, d), lambda i: (i, 0)),      # props tile
                pl.BlockSpec((vpad, k), lambda i: (0, 0)),    # fused table T1
                pl.BlockSpec((d, k), lambda i: (0, 0)),       # fused prop weight
                pl.BlockSpec((1, k), lambda i: (0, 0)),       # fused bias
            ],
            out_specs=pl.BlockSpec((tm, k), lambda i: (i, 0)),
        ),
        compiler_params=pltpu.CompilerParams(
            dimension_semantics=("parallel",)),
        cost_estimate=pl.CostEstimate(
            flops=flops, transcendentals=0, bytes_accessed=bytes_accessed),
    )(ids2d, props_p, t1, w2, b_fused)
    return out[:n]


def embed_ncp_reference(atom_type_ids, props, emb_table_pad, w_prop, b_prop,
                        w_comp, b_comp):
    # Un-fused reference: exactly the PyTorch module's forward, in f32.
    atom_out = emb_table_pad[atom_type_ids]               # (N, K) gather
    prop_out = props @ w_prop + b_prop                    # (N, K)
    concat = jnp.concatenate([atom_out, prop_out], axis=1)
    return concat @ w_comp + b_comp


if __name__ == "__main__":
    key = jax.random.PRNGKey(0)
    k_emb, k_wp, k_bp, k_wc, k_bc, k_props, k_ids = jax.random.split(key, 7)

    # Deterministic synthetic parameters (shapes match the PyTorch module).
    emb_table = jax.random.normal(k_emb, (NUM_EMBEDDINGS, KERNEL_DIM),
                                  jnp.float32)
    # Pad embedding table rows to 128 (valid ids never touch the pad rows).
    emb_table_pad = jnp.zeros((V_PAD, KERNEL_DIM), jnp.float32)
    emb_table_pad = emb_table_pad.at[:NUM_EMBEDDINGS].set(emb_table)

    # nn.Linear(input_dim, kernel_dim): weight (K, D) -> pass transposed (D, K)
    w_prop = jax.random.normal(k_wp, (INPUT_DIM, KERNEL_DIM), jnp.float32) * 0.1
    b_prop = jax.random.normal(k_bp, (1, KERNEL_DIM), jnp.float32) * 0.1
    # nn.Linear(2K, K): weight (K, 2K) -> pass transposed (2K, K)
    w_comp = jax.random.normal(k_wc, (2 * KERNEL_DIM, KERNEL_DIM),
                               jnp.float32) * 0.05
    b_comp = jax.random.normal(k_bc, (1, KERNEL_DIM), jnp.float32) * 0.1

    # Inputs: props (N, D) float, atom_type_ids (N,) int in [0, NUM_EMBEDDINGS)
    props = jax.random.normal(k_props, (N, INPUT_DIM), jnp.float32)
    atom_type_ids = jax.random.randint(k_ids, (N,), 0, NUM_EMBEDDINGS,
                                       dtype=jnp.int32)

    out = embed_ncp_forward(atom_type_ids, props, emb_table_pad,
                            w_prop, b_prop, w_comp, b_comp)
    out = jax.block_until_ready(out)

    ref = embed_ncp_reference(atom_type_ids, props, emb_table_pad,
                              w_prop, b_prop, w_comp, b_comp)
    assert out.shape == (N, KERNEL_DIM)
    assert jnp.allclose(out, ref, atol=1e-4, rtol=1e-4), "mismatch vs reference"

    print("KERNEL_OK")
</pallas_src>

<mosaic_0001>
module attributes {stable_mosaic.version = 11 : i64} {
  func.func @embed_ncp_fused_kernel(%arg0: i32, %arg1: memref<16x1xi32, #tpu.memory_space<vmem>>, %arg2: memref<16x16xf32, #tpu.memory_space<vmem>>, %arg3: memref<128x128xf32, #tpu.memory_space<vmem>>, %arg4: memref<16x128xf32, #tpu.memory_space<vmem>>, %arg5: memref<1x128xf32, #tpu.memory_space<vmem>>, %arg6: memref<16x128xf32, #tpu.memory_space<vmem>>) attributes {dimension_semantics = [#tpu.dimension_semantics<parallel>], iteration_bounds = array<i64: 1>, scalar_prefetch = 0 : i64, scratch_operands = 0 : i64, tpu.core_type = #tpu.core_type<tc>, window_params = [{transform_indices = @transform_0, window_bounds = array<i64: 16, 1>}, {transform_indices = @transform_1, window_bounds = array<i64: 16, 16>}, {pipeline_mode = #tpu.pipeline_mode<synchronous>, transform_indices = @transform_2, window_bounds = array<i64: 128, 128>}, {pipeline_mode = #tpu.pipeline_mode<synchronous>, transform_indices = @transform_3, window_bounds = array<i64: 16, 128>}, {pipeline_mode = #tpu.pipeline_mode<synchronous>, transform_indices = @transform_4, window_bounds = array<i64: 1, 128>}, {transform_indices = @transform_5, window_bounds = array<i64: 16, 128>}]} {
    %c0 = arith.constant 0 : index
    %c0_0 = arith.constant 0 : index
    %0 = vector.load %arg1[%c0, %c0_0] : memref<16x1xi32, #tpu.memory_space<vmem>>, vector<16x1xi32>
    %1 = tpu.iota {dimensions = array<i32: 1>} : vector<16x128xi32>
    %2 = vector.broadcast %0 : vector<16x1xi32> to vector<16x128xi32>
    %3 = arith.cmpi eq, %1, %2 : vector<16x128xi32>
    %4 = arith.extui %3 : vector<16x128xi1> to vector<16x128xi32>
    %5 = arith.sitofp %4 : vector<16x128xi32> to vector<16x128xf32>
    %c0_1 = arith.constant 0 : index
    %c0_2 = arith.constant 0 : index
    %6 = vector.load %arg3[%c0_1, %c0_2] : memref<128x128xf32, #tpu.memory_space<vmem>>, vector<128x128xf32>
    %cst = arith.constant dense<0.000000e+00> : vector<16x128xf32>
    %7 = tpu.matmul %5, %6, %cst {dimension_numbers = #tpu.dot_dimension_numbers<[1], [0], [0], [1], [0, 0, 1, 1], [], []>} : vector<16x128xf32>, vector<128x128xf32>, vector<16x128xf32> -> vector<16x128xf32>
    %c0_3 = arith.constant 0 : index
    %c0_4 = arith.constant 0 : index
    %8 = vector.load %arg2[%c0_3, %c0_4] : memref<16x16xf32, #tpu.memory_space<vmem>>, vector<16x16xf32>
    %c0_5 = arith.constant 0 : index
    %c0_6 = arith.constant 0 : index
    %9 = vector.load %arg4[%c0_5, %c0_6] : memref<16x128xf32, #tpu.memory_space<vmem>>, vector<16x128xf32>
    %cst_7 = arith.constant dense<0.000000e+00> : vector<16x128xf32>
    %10 = tpu.matmul %8, %9, %cst_7 {dimension_numbers = #tpu.dot_dimension_numbers<[1], [0], [0], [1], [0, 0, 1, 1], [], []>} : vector<16x16xf32>, vector<16x128xf32>, vector<16x128xf32> -> vector<16x128xf32>
    %11 = arith.addf %7, %10 : vector<16x128xf32>
    %c0_8 = arith.constant 0 : index
    %c0_9 = arith.constant 0 : index
    %12 = vector.load %arg5[%c0_8, %c0_9] : memref<1x128xf32, #tpu.memory_space<vmem>>, vector<1x128xf32>
    %13 = vector.broadcast %12 : vector<1x128xf32> to vector<16x128xf32>
    %14 = arith.addf %11, %13 : vector<16x128xf32>
    %c0_10 = arith.constant 0 : index
    %c0_11 = arith.constant 0 : index
    %15 = vector.load %arg6[%c0_10, %c0_11] : memref<16x128xf32, #tpu.memory_space<vmem>>, vector<16x128xf32>
    tpu.vector_store %arg6[%c0_10, %c0_11], %14 {strides = array<i32>} : memref<16x128xf32, #tpu.memory_space<vmem>>, vector<16x128xf32>,
    return
  }
  func.func @transform_0(%arg0: i32) -> (i32, i32) {
    %c0_i32 = arith.constant 0 : i32
    %c0_i32_0 = arith.constant 0 : i32
    return %arg0, %c0_i32 : i32, i32
  }
  func.func @transform_1(%arg0: i32) -> (i32, i32) {
    %c0_i32 = arith.constant 0 : i32
    %c0_i32_0 = arith.constant 0 : i32
    return %arg0, %c0_i32 : i32, i32
  }
  func.func @transform_2(%arg0: i32) -> (i32, i32) {
    %c0_i32 = arith.constant 0 : i32
    %c0_i32_0 = arith.constant 0 : i32
    %c0_i32_1 = arith.constant 0 : i32
    return %c0_i32, %c0_i32_0 : i32, i32
  }
  func.func @transform_3(%arg0: i32) -> (i32, i32) {
    %c0_i32 = arith.constant 0 : i32
    %c0_i32_0 = arith.constant 0 : i32
    %c0_i32_1 = arith.constant 0 : i32
    return %c0_i32, %c0_i32_0 : i32, i32
  }
  func.func @transform_4(%arg0: i32) -> (i32, i32) {
    %c0_i32 = arith.constant 0 : i32
    %c0_i32_0 = arith.constant 0 : i32
    %c0_i32_1 = arith.constant 0 : i32
    return %c0_i32, %c0_i32_0 : i32, i32
  }
  func.func @transform_5(%arg0: i32) -> (i32, i32) {
    %c0_i32 = arith.constant 0 : i32
    %c0_i32_0 = arith.constant 0 : i32
    return %arg0, %c0_i32 : i32, i32
  }
}

</mosaic_0001>

<llo_original>
// kernel: tpu_custom_call.1
$region0: #{tpu_custom_call.1}
  #allocation0 [shape = 'u32[]', space=smem, size = 0x4, offset = 0x4, fixed_abs, tag = 'smem constant byte address 0x4 - core index']
  #allocation1 [shape = 'u32[72,128]{1,0:T(1,128)}', space=vmem, size = 0x9000, scoped, tag = 'internal scratch']
  %s0 = inlined_call_operand.vmem [shape: s32[16,1], index: 0, kind: input, shape index: {}]
  %s1 = inlined_call_operand.vmem [shape: f32[16,16], index: 1, kind: input, shape index: {}]
  %s2 = inlined_call_operand.hbm [shape: f32[128,128], index: 2, kind: input, shape index: {}]
  %s3 = inlined_call_operand.hbm [shape: f32[16,128], index: 3, kind: input, shape index: {}]
  %s4 = inlined_call_operand.vmem [shape: f32[1,128], index: 4, kind: input, shape index: {}]
  %s5 = inlined_call_operand.hbm [shape: f32[16,128], index: 5, kind: output, shape index: {}]
  %s6 = sld [smem:[#allocation0]]
  $region38: #{tpu_custom_call.1} parent=0
    _
  %s8 = ssub.s32 1, %s6
  %s9 = scalar_select 0, %s8, %s6
  $region1: #{tpu_custom_call.1} parent=0
    #allocation2 [shape = 'u8[65536]{0}', space=vmem, size = 0x10000, scoped, tag = 'input window, operand 2, single buffered']
    #allocation3 [shape = 's32[1]{0}', space=sflag, size = 0x4, scoped, tag = 'scoped memory for tpu_custom_call.1']
    #allocation4 [shape = 's32[1]{0}', space=sflag, size = 0x4, scoped, tag = 'scoped memory for tpu_custom_call.1']
    #allocation5 [shape = 'u8[8192]{0}', space=vmem, size = 0x2000, scoped, tag = 'input window, operand 3, single buffered']
    #allocation6 [shape = 's32[1]{0}', space=sflag, size = 0x4, scoped, tag = 'scoped memory for tpu_custom_call.1']
    #allocation7 [shape = 'u8[8192]{0}', space=vmem, size = 0x2000, scoped, tag = 'output window, operand 0, single buffered']
    %10 = vsyncpa [#allocation3], 0
    %11 = vsyncpa [#allocation6], 0
    %12 = vsyncpa [#allocation4], 0
    // Predicated region
    $region2: #{tpu_custom_call.1} parent=1 // pred_check
      _
    $region3: #{tpu_custom_call.1} parent=1 // pred_check_branch
      %14 = sbr.rel (0) target = $region5
    $region4: #{tpu_custom_call.1} parent=1 // pred_region
      _
    $region5: #{tpu_custom_call.1} parent=1 // pred_fallthru
      _
    // Predicated region
    $region6: #{tpu_custom_call.1} parent=1 // pred_check
      _
    $region7: #{tpu_custom_call.1} parent=1 // pred_check_branch
      %16 = sbr.rel (0) target = $region9
    $region8: #{tpu_custom_call.1} parent=1 // pred_region
      _
    $region9: #{tpu_custom_call.1} parent=1 // pred_fallthru
      _
    // Predicated region
    $region10: #{tpu_custom_call.1} parent=1 // pred_check
      _
    $region11: #{tpu_custom_call.1} parent=1 // pred_check_branch
      %18 = sbr.rel (0) target = $region13
    $region12: #{tpu_custom_call.1} parent=1 // pred_region
      %20 = vsyncadd [#allocation3], 0
      %s21 = sshll.u32 %s2, 4
      %s22 = int_to_ptr.hbm [resolvable:$true] %s21
      %s23 = sshll.u32 [#allocation2], 4
      %s24 = int_to_ptr.vmem [resolvable:$true] %s23
      %29 = dma.hbm_to_vmem [thread:$0]  %s22, 2048, %s24, [#allocation3], 128, 128, 8
    $region13: #{tpu_custom_call.1} parent=1 // pred_fallthru
      _
    // Predicated region
    $region14: #{tpu_custom_call.1} parent=1 // pred_check
      _
    $region15: #{tpu_custom_call.1} parent=1 // pred_check_branch
      %31 = sbr.rel (0) target = $region17
    $region16: #{tpu_custom_call.1} parent=1 // pred_region
      %33 = vsyncadd [#allocation6], 0
      %s34 = sshll.u32 %s3, 4
      %s35 = int_to_ptr.hbm [resolvable:$true] %s34
      %s36 = sshll.u32 [#allocation5], 4
      %s37 = int_to_ptr.vmem [resolvable:$true] %s36
      %42 = dma.hbm_to_vmem [thread:$0]  %s35, 256, %s37, [#allocation6], 128, 128, 8
    $region17: #{tpu_custom_call.1} parent=1 // pred_fallthru
      _
    // Predicated region
    $region18: #{tpu_custom_call.1} parent=1 // pred_check
      _
    $region19: #{tpu_custom_call.1} parent=1 // pred_check_branch
      %44 = sbr.rel (0) target = $region21
    $region20: #{tpu_custom_call.1} parent=1 // pred_region
      _
    $region21: #{tpu_custom_call.1} parent=1 // pred_fallthru
      _
    // Predicated region
    $region22: #{tpu_custom_call.1} parent=1 // pred_check
      _
    $region23: #{tpu_custom_call.1} parent=1 // pred_check_branch
      %46 = sbr.rel (0) target = $region25
    $region24: #{tpu_custom_call.1} parent=1 // pred_region
      %48 = dma.done [#allocation3], 2048
    $region25: #{tpu_custom_call.1} parent=1 // pred_fallthru
      _
    // Predicated region
    $region26: #{tpu_custom_call.1} parent=1 // pred_check
      _
    $region27: #{tpu_custom_call.1} parent=1 // pred_check_branch
      %50 = sbr.rel (0) target = $region29
    $region28: #{tpu_custom_call.1} parent=1 // pred_region
      %52 = dma.done [#allocation6], 256
    $region29: #{tpu_custom_call.1} parent=1 // pred_fallthru
      _
    %v53 = vld [vmem:[%s0] sm:$0xff]
    %v54 = vld [vmem:[%s0 + $0x8] sm:$0xff]
    %v55 = vlaneseq
    %v56 = vand.u32 %v55, 127
    %57 = vset.pattern.permute.xlu0 0
    %58 = vperm.xlu0 %57, %v53
    %v59 = vpop.permute.xlu0 %58
    %60 = vset.pattern.permute.xlu0 0
    %61 = vperm.xlu0 %60, %v54
    %v62 = vpop.permute.xlu0 %61
    %vm63 = vcmp.eq.s32.totalorder %v56, %v59
    %vm64 = vcmp.eq.s32.totalorder %v56, %v62
    %v65 = vsel %vm63, 1, 0
    %v66 = vsel %vm64, 1, 0
    %v67 = vcvt.s32.f32 %v65
    %v68 = vcvt.s32.f32 %v66
    %v69 = vld [vmem:[#allocation2] sm:$0xff]
    %v70 = vld [vmem:[#allocation2 + $0x8] sm:$0xff]
    %v71 = vld [vmem:[#allocation2 + $0x10] sm:$0xff]
    %v72 = vld [vmem:[#allocation2 + $0x18] sm:$0xff]
    %v73 = vld [vmem:[#allocation2 + $0x20] sm:$0xff]
    %v74 = vld [vmem:[#allocation2 + $0x28] sm:$0xff]
    %v75 = vld [vmem:[#allocation2 + $0x30] sm:$0xff]
    %v76 = vld [vmem:[#allocation2 + $0x38] sm:$0xff]
    %v77 = vld [vmem:[#allocation2 + $0x40] sm:$0xff]
    %v78 = vld [vmem:[#allocation2 + $0x48] sm:$0xff]
    %v79 = vld [vmem:[#allocation2 + $0x50] sm:$0xff]
    %v80 = vld [vmem:[#allocation2 + $0x58] sm:$0xff]
    %v81 = vld [vmem:[#allocation2 + $0x60] sm:$0xff]
    %v82 = vld [vmem:[#allocation2 + $0x68] sm:$0xff]
    %v83 = vld [vmem:[#allocation2 + $0x70] sm:$0xff]
    %v84 = vld [vmem:[#allocation2 + $0x78] sm:$0xff]
    %v85 = vld [vmem:[%s1] sm:$0xff]
    %v86 = vld [vmem:[%s1 + $0x8] sm:$0xff]
    %v87 = vld [vmem:[#allocation5] sm:$0xff]
    %v88 = vld [vmem:[#allocation5 + $0x8] sm:$0xff]
    %vm89 = vcmask 130048
    %v91 = vsel %vm89, %v85, 0
    %v94 = vsel %vm89, %v86, 0
    %96 = vmatpush.msra.mxu0 0.0
    %97 = vmatpush.msra.mxu0 0.0
    %98 = vmatpush.msra.mxu0 0.0
    %99 = vmatpush.msra.mxu0 0.0
    %100 = vmatpush.msra.mxu0 0.0
    %101 = vmatpush.msra.mxu0 0.0
    %102 = vmatpush.msra.mxu0 0.0
    %103 = vmatpush.msra.mxu0 0.0
    %104 = vmatpush.msra.mxu0 0.0
    %105 = vmatpush.msra.mxu0 0.0
    %106 = vmatpush.msra.mxu0 0.0
    %107 = vmatpush.msra.mxu0 0.0
    %108 = vmatpush.msra.mxu0 0.0
    %109 = vmatpush.msra.mxu0 0.0
    %110 = vmatpush.msra.mxu0 %v88
    %111 = vmatpush.msra.mxu0 %v87
    %112 = vmatmul.f32.gmra.mxu0 %v91
    %v113 = vpop.f32.mrf.mxu0
    %v114 = vadd.f32 0.0, %v113
    %115 = vmatmul.f32.gmra.mxu0 %v94
    %v116 = vpop.f32.mrf.mxu0
    %v117 = vadd.f32 0.0, %v116
    %118 = vdwg.mxu0
    %119 = vmatpush.msra.mxu0 %v84
    %120 = vmatpush.msra.mxu0 %v83
    %121 = vmatpush.msra.mxu0 %v82
    %122 = vmatpush.msra.mxu0 %v81
    %123 = vmatpush.msra.mxu0 %v80
    %124 = vmatpush.msra.mxu0 %v79
    %125 = vmatpush.msra.mxu0 %v78
    %126 = vmatpush.msra.mxu0 %v77
    %127 = vmatpush.msra.mxu0 %v76
    %128 = vmatpush.msra.mxu0 %v75
    %129 = vmatpush.msra.mxu0 %v74
    %130 = vmatpush.msra.mxu0 %v73
    %131 = vmatpush.msra.mxu0 %v72
    %132 = vmatpush.msra.mxu0 %v71
    %133 = vmatpush.msra.mxu0 %v70
    %134 = vmatpush.msra.mxu0 %v69
    %135 = vmatmul.f32.gmra.mxu0 %v67
    %v136 = vpop.f32.mrf.mxu0
    %v137 = vadd.f32 %v114, %v136
    %138 = vmatmul.f32.gmra.mxu0 %v68
    %v139 = vpop.f32.mrf.mxu0
    %v140 = vadd.f32 %v117, %v139
    %141 = vdwg.mxu0
    %v142 = vld [vmem:[%s4] sm:$0x1]
    %v144 = vperm.slane %v142, 0
    %v146 = vadd.f32 %v137, %v144
    %v147 = vadd.f32 %v140, %v144
    %148 = vst [vmem:[#allocation7] sm:$0xff] %v146
    %149 = vst [vmem:[#allocation7 + $0x8] sm:$0xff] %v147
    // Predicated region
    $region30: #{tpu_custom_call.1} parent=1 // pred_check
      _
    $region31: #{tpu_custom_call.1} parent=1 // pred_check_branch
      %151 = sbr.rel (0) target = $region33
    $region32: #{tpu_custom_call.1} parent=1 // pred_region
      %153 = vsyncadd [#allocation4], 0
      %s154 = sshll.u32 [#allocation7], 4
      %s155 = int_to_ptr.vmem [resolvable:$true] %s154
      %s156 = sshll.u32 %s5, 4
      %s157 = int_to_ptr.hbm [resolvable:$true] %s156
      %162 = dma.vmem_to_hbm [thread:$0]  %s155, 256, %s157, [#allocation4], 128, 128, 8
    $region33: #{tpu_custom_call.1} parent=1 // pred_fallthru
      _
    // Predicated region
    $region34: #{tpu_custom_call.1} parent=1 // pred_check
      _
    $region35: #{tpu_custom_call.1} parent=1 // pred_check_branch
      %164 = sbr.rel (0) target = $region37
    $region36: #{tpu_custom_call.1} parent=1 // pred_region
      %166 = dma.done [#allocation4], 256
    $region37: #{tpu_custom_call.1} parent=1 // pred_fallthru
      _
    %167 = vsyncpa [#allocation3], 1
    %168 = vsyncpa [#allocation6], 1
    %169 = vsyncpa [#allocation4], 1

</llo_original>
